<compile_context>
chip_gen: v7x
topology: tpu7x:2x2x1
jax: 0.10.0
libtpu: 0.0.40
codegen_flags: <defaults>
</compile_context>

<pallas_src>
import functools

import jax
import jax.numpy as jnp
from jax import lax
from jax.experimental import pallas as pl
from jax.experimental.pallas import tpu as pltpu


# ---------------------------------------------------------------------------
# Kernel
# ---------------------------------------------------------------------------
def _double_conv_kernel(x_ref, w1_ref, b1_ref, w2_ref, b2_ref, o_ref, *, H, Bb):
    # x_ref : (1, Bb*(H+2), W*Cin)   bf16, Bb vertically-padded images stacked
    # w1_ref: (3, W*Cin,  W*Cmid)    bf16 banded conv1 weights (BN1 scale folded)
    # b1_ref: (1, W*Cmid)            f32 BN1 shift, tiled over x
    # w2_ref: (3, W*Cmid, W*Cout)    bf16 banded conv2 weights (BN2 scale folded)
    # b2_ref: (1, W*Cout)            f32 BN2 shift, tiled over x
    # o_ref : (1, Bb*(H+2)-2, W*Cout) lane-dense output (valid rows extracted in glue)
    Mp = Bb * (H + 2) - 2
    WCmid = b1_ref.shape[1]

    x = x_ref[0]                                   # (Bb*(H+2), W*Cin) bf16

    # ---- conv1 (+ folded BN1 scale): 3 banded matmuls, one per kernel row ----
    acc1 = jnp.dot(x[0:Mp], w1_ref[0], preferred_element_type=jnp.float32)
    for dy in (1, 2):
        acc1 = acc1 + jnp.dot(x[dy:dy + Mp], w1_ref[dy],
                              preferred_element_type=jnp.float32)

    # ---- BN1 shift + ReLU (f32 epilogue); zero the cross-image junk rows so
    # they act as the per-image vertical zero-pad of the intermediate.
    row = lax.broadcasted_iota(jnp.int32, (Mp, 1), 0)
    valid = (row % (H + 2)) < H
    h = jnp.where(valid, jnp.maximum(acc1 + b1_ref[...], 0.0), 0.0)

    # ---- padded intermediate built in-register (no VMEM scratch round-trip) ----
    zrow = jnp.zeros((1, WCmid), jnp.bfloat16)
    hp = jnp.concatenate([zrow, h.astype(jnp.bfloat16), zrow], axis=0)  # (Bb*(H+2), W*Cmid)

    # ---- conv2 (+ folded BN2 scale): 3 banded matmuls ----
    acc2 = jnp.dot(hp[0:Mp], w2_ref[0], preferred_element_type=jnp.float32)
    for dy in (1, 2):
        acc2 = acc2 + jnp.dot(hp[dy:dy + Mp], w2_ref[dy],
                              preferred_element_type=jnp.float32)

    # ---- BN2 shift + ReLU, lane-dense store (last dim = W*Cout, mult of 128) ----
    o_ref[0] = jnp.maximum(acc2 + b2_ref[...], 0.0).astype(o_ref.dtype)


# ---------------------------------------------------------------------------
# Parameter preparation (run ONCE per set of weights, not per forward call)
# ---------------------------------------------------------------------------
def _banded_weight(w_oihw, scale, W, dtype=jnp.bfloat16):
    """Per-dy block-banded weight matrices with BN scale folded in, no W pad.

    w_oihw: (Cout, Cin, 3, 3) PyTorch conv weight; scale: (Cout,).
    Returns big: (3, W*Cin, W*Cout) with
       big[dy, k*Cin + c, x*Cout + o] = w[o, c, dy, k-x+1] * scale[o]
                                        if |k - x| <= 1 else 0,
    so a vertically-padded row slab (M, W*Cin) @ big[dy] accumulates the three
    horizontal taps of kernel row dy for all W output columns at once (the
    validity mask encodes the SAME horizontal zero-padding).
    NOTE: scales O(W^2*Cin*Cout); for large W / channels use a dense-K im2col
    formulation instead (see header comment).
    """
    w = jnp.transpose(w_oihw, (2, 3, 1, 0)) * scale[None, None, None, :]  # (ky,kx,Cin,Cout)
    Cin, Cout = w.shape[2], w.shape[3]
    k = jnp.arange(W)
    x = jnp.arange(W)
    d = k[:, None] - x[None, :]                         # (W, W)
    valid = ((d >= -1) & (d <= 1)).astype(w.dtype)
    tap = jnp.clip(d + 1, 0, 2)
    sel = w[:, tap, :, :] * valid[None, :, :, None, None]   # (3, W, W, Cin, Cout)
    big = jnp.transpose(sel, (0, 1, 3, 2, 4)).reshape(3, W * Cin, W * Cout)
    return big.astype(dtype)


def prepare_double_conv_params(w1, g1, beta1, m1, v1, w2, g2, beta2, m2, v2, W,
                               eps=1e-5):
    """Fold eval-mode BN into the convs and build banded bf16 weights (once)."""
    s1 = g1 / jnp.sqrt(v1 + eps)
    s2 = g2 / jnp.sqrt(v2 + eps)
    w1_big = _banded_weight(w1, s1, W)                          # (3, W*Cin,  W*Cmid) bf16
    w2_big = _banded_weight(w2, s2, W)                          # (3, W*Cmid, W*Cout) bf16
    b1_row = jnp.tile(beta1 - m1 * s1, W)[None, :].astype(jnp.float32)   # (1, W*Cmid)
    b2_row = jnp.tile(beta2 - m2 * s2, W)[None, :].astype(jnp.float32)   # (1, W*Cout)
    return w1_big, b1_row, w2_big, b2_row


def _pick_batch_block(B, H):
    """Largest divisor of B whose stacked slab reaches M >= 256 rows (MXU rows
    on v6e/v7x), else the largest divisor available."""
    best = 1
    for bb in range(1, B + 1):
        if B % bb == 0:
            best = bb
            if bb * (H + 2) - 2 >= 256:
                break
    return best


# ---------------------------------------------------------------------------
# Forward pass
# ---------------------------------------------------------------------------
def double_conv_apply(x_nchw, params):
    """DoubleConv forward. x_nchw: (B, Cin, H, W); params from prepare_*()."""
    w1_big, b1_row, w2_big, b2_row = params
    B, Cin, H, W = x_nchw.shape
    Cmid = w1_big.shape[2] // W
    Cout = w2_big.shape[2] // W

    Bb = _pick_batch_block(B, H)          # images stacked per grid step
    G = B // Bb
    Mp = Bb * (H + 2) - 2                 # matmul M per MXU push

    # ---- glue: NHWC, vertical-only zero-pad, lane-dense (x, c) flattening ----
    x = jnp.transpose(x_nchw, (0, 2, 3, 1))                    # (B, H, W, Cin)
    xp = jnp.pad(x, ((0, 0), (1, 1), (0, 0), (0, 0)))          # pad rows only
    x_stk = xp.reshape(G, Bb * (H + 2), W * Cin).astype(jnp.bfloat16)

    kernel = functools.partial(_double_conv_kernel, H=H, Bb=Bb)

    out_flat = pl.pallas_call(
        kernel,
        out_shape=jax.ShapeDtypeStruct((G, Mp, W * Cout), x_nchw.dtype),
        grid_spec=pltpu.PrefetchScalarGridSpec(
            num_scalar_prefetch=0,
            grid=(G,),
            in_specs=[
                pl.BlockSpec((1, Bb * (H + 2), W * Cin), lambda g: (g, 0, 0)),
                # constant-index blocks: weights / shifts stay VMEM-resident
                # across grid steps (no per-step re-DMA).
                pl.BlockSpec((3, W * Cin, W * Cmid), lambda g: (0, 0, 0)),
                pl.BlockSpec((1, W * Cmid), lambda g: (0, 0)),
                pl.BlockSpec((3, W * Cmid, W * Cout), lambda g: (0, 0, 0)),
                pl.BlockSpec((1, W * Cout), lambda g: (0, 0)),
            ],
            out_specs=pl.BlockSpec((1, Mp, W * Cout), lambda g: (g, 0, 0)),
        ),
        compiler_params=pltpu.CompilerParams(
            dimension_semantics=("parallel",)),
    )(x_stk, w1_big, b1_row, w2_big, b2_row)

    # Extract the H valid rows of each image (junk/pad rows dropped), back to NCHW.
    row_idx = jnp.arange(Bb)[:, None] * (H + 2) + jnp.arange(H)[None, :]   # (Bb, H)
    out = out_flat[:, row_idx, :]                       # (G, Bb, H, W*Cout)
    out = out.reshape(B, H, W, Cout)
    return jnp.transpose(out, (0, 3, 1, 2))


# ---------------------------------------------------------------------------
# References
# ---------------------------------------------------------------------------
def _conv_nchw(x, w, preferred=None):
    return lax.conv_general_dilated(
        x, w, window_strides=(1, 1), padding=((1, 1), (1, 1)),
        dimension_numbers=('NCHW', 'OIHW', 'NCHW'),
        preferred_element_type=preferred)


def _reference_f32(x, w1, g1, beta1, m1, v1, w2, g2, beta2, m2, v2, eps=1e-5):
    """Pure-f32 reference matching PyTorch eval-mode semantics exactly."""
    def bn(z, g, b, m, v):
        return ((z - m[None, :, None, None]) / jnp.sqrt(v[None, :, None, None] + eps)
                * g[None, :, None, None] + b[None, :, None, None])
    h = jnp.maximum(bn(_conv_nchw(x, w1), g1, beta1, m1, v1), 0.0)
    return jnp.maximum(bn(_conv_nchw(h, w2), g2, beta2, m2, v2), 0.0)


def _reference_bf16(x, w1, g1, beta1, m1, v1, w2, g2, beta2, m2, v2, eps=1e-5):
    """Reference matched to the kernel's numerics: BN scale folded into the
    weights, bf16 operands, f32 accumulation, f32 shift+ReLU epilogue."""
    s1 = g1 / jnp.sqrt(v1 + eps)
    t1 = beta1 - m1 * s1
    s2 = g2 / jnp.sqrt(v2 + eps)
    t2 = beta2 - m2 * s2

    def conv_bf16(z, w_folded):
        return _conv_nchw(z.astype(jnp.bfloat16), w_folded.astype(jnp.bfloat16),
                          preferred=jnp.float32)

    h = jnp.maximum(conv_bf16(x, w1 * s1[:, None, None, None])
                    + t1[None, :, None, None], 0.0)
    return jnp.maximum(conv_bf16(h, w2 * s2[:, None, None, None])
                       + t2[None, :, None, None], 0.0)


# ---------------------------------------------------------------------------
# Self-test
# ---------------------------------------------------------------------------
if __name__ == "__main__":
    B, Cin, Cout, H, W = 2, 4, 8, 16, 16
    Cmid = Cout  # mid_channels defaults to out_channels

    key = jax.random.PRNGKey(0)
    ks = jax.random.split(key, 11)
    x = jax.random.normal(ks[0], (B, Cin, H, W), jnp.float32)

    # Deterministic synthetic parameters (shapes from DoubleConv.__init__).
    w1 = jax.random.normal(ks[1], (Cmid, Cin, 3, 3), jnp.float32) * 0.1
    g1 = 1.0 + 0.1 * jax.random.normal(ks[2], (Cmid,), jnp.float32)
    beta1 = 0.1 * jax.random.normal(ks[3], (Cmid,), jnp.float32)
    m1 = 0.1 * jax.random.normal(ks[4], (Cmid,), jnp.float32)
    v1 = jnp.abs(jax.random.normal(ks[5], (Cmid,), jnp.float32)) + 0.5

    w2 = jax.random.normal(ks[6], (Cout, Cmid, 3, 3), jnp.float32) * 0.1
    g2 = 1.0 + 0.1 * jax.random.normal(ks[7], (Cout,), jnp.float32)
    beta2 = 0.1 * jax.random.normal(ks[8], (Cout,), jnp.float32)
    m2 = 0.1 * jax.random.normal(ks[9], (Cout,), jnp.float32)
    v2 = jnp.abs(jax.random.normal(ks[10], (Cout,), jnp.float32)) + 0.5

    # Banded/folded parameters built once; forward jitted.
    params = prepare_double_conv_params(w1, g1, beta1, m1, v1,
                                        w2, g2, beta2, m2, v2, W)
    apply_fn = jax.jit(double_conv_apply)
    out = jax.block_until_ready(apply_fn(x, params))

    assert out.shape == (B, Cout, H, W), out.shape

    # Tight check vs a bf16-operand-matched reference (same quantization).
    ref16 = _reference_bf16(x, w1, g1, beta1, m1, v1, w2, g2, beta2, m2, v2)
    err16 = float(jnp.max(jnp.abs(out - ref16)))
    assert jnp.allclose(out, ref16, rtol=5e-3, atol=5e-3), err16

    # Loose semantics check vs the full-f32 PyTorch-eval reference
    # (bf16 matmul operands => relaxed tolerance).
    ref32 = _reference_f32(x, w1, g1, beta1, m1, v1, w2, g2, beta2, m2, v2)
    err32 = float(jnp.max(jnp.abs(out - ref32)))
    assert jnp.allclose(out, ref32, rtol=5e-2, atol=5e-2), err32

    print("KERNEL_OK")
</pallas_src>

<mosaic_0001>
module attributes {stable_mosaic.version = 11 : i64} {
  func.func @_double_conv_kernel(%arg0: i32, %arg1: memref<1x36x64xbf16, #tpu.memory_space<vmem>>, %arg2: memref<3x64x128xbf16, #tpu.memory_space<vmem>>, %arg3: memref<1x128xf32, #tpu.memory_space<vmem>>, %arg4: memref<3x128x128xbf16, #tpu.memory_space<vmem>>, %arg5: memref<1x128xf32, #tpu.memory_space<vmem>>, %arg6: memref<1x34x128xf32, #tpu.memory_space<vmem>>) attributes {dimension_semantics = [#tpu.dimension_semantics<parallel>], iteration_bounds = array<i64: 1>, scalar_prefetch = 0 : i64, scratch_operands = 0 : i64, tpu.core_type = #tpu.core_type<tc>, window_params = [{transform_indices = @transform_0, window_bounds = array<i64: 1, 36, 64>}, {pipeline_mode = #tpu.pipeline_mode<synchronous>, transform_indices = @transform_1, window_bounds = array<i64: 3, 64, 128>}, {pipeline_mode = #tpu.pipeline_mode<synchronous>, transform_indices = @transform_2, window_bounds = array<i64: 1, 128>}, {pipeline_mode = #tpu.pipeline_mode<synchronous>, transform_indices = @transform_3, window_bounds = array<i64: 3, 128, 128>}, {pipeline_mode = #tpu.pipeline_mode<synchronous>, transform_indices = @transform_4, window_bounds = array<i64: 1, 128>}, {transform_indices = @transform_5, window_bounds = array<i64: 1, 34, 128>}]} {
    %c0 = arith.constant 0 : index
    %c0_0 = arith.constant 0 : index
    %c0_1 = arith.constant 0 : index
    %0 = vector.load %arg1[%c0, %c0_0, %c0_1] : memref<1x36x64xbf16, #tpu.memory_space<vmem>>, vector<1x36x64xbf16>
    %1 = vector.shape_cast %0 : vector<1x36x64xbf16> to vector<36x64xbf16>
    %2 = vector.extract_strided_slice %1 {offsets = [0, 0], sizes = [34, 64], strides = [1, 1]} : vector<36x64xbf16> to vector<34x64xbf16>
    %c0_2 = arith.constant 0 : index
    %c0_3 = arith.constant 0 : index
    %c0_4 = arith.constant 0 : index
    %3 = vector.load %arg2[%c0_2, %c0_3, %c0_4] : memref<3x64x128xbf16, #tpu.memory_space<vmem>>, vector<1x64x128xbf16>
    %4 = vector.shape_cast %3 : vector<1x64x128xbf16> to vector<64x128xbf16>
    %cst = arith.constant dense<0.000000e+00> : vector<34x128xf32>
    %5 = tpu.matmul %2, %4, %cst {dimension_numbers = #tpu.dot_dimension_numbers<[1], [0], [0], [1], [0, 0, 1, 1], [], []>} : vector<34x64xbf16>, vector<64x128xbf16>, vector<34x128xf32> -> vector<34x128xf32>
    %6 = vector.extract_strided_slice %1 {offsets = [1, 0], sizes = [34, 64], strides = [1, 1]} : vector<36x64xbf16> to vector<34x64xbf16>
    %c1 = arith.constant 1 : index
    %c0_5 = arith.constant 0 : index
    %c0_6 = arith.constant 0 : index
    %7 = vector.load %arg2[%c1, %c0_5, %c0_6] : memref<3x64x128xbf16, #tpu.memory_space<vmem>>, vector<1x64x128xbf16>
    %8 = vector.shape_cast %7 : vector<1x64x128xbf16> to vector<64x128xbf16>
    %cst_7 = arith.constant dense<0.000000e+00> : vector<34x128xf32>
    %9 = tpu.matmul %6, %8, %cst_7 {dimension_numbers = #tpu.dot_dimension_numbers<[1], [0], [0], [1], [0, 0, 1, 1], [], []>} : vector<34x64xbf16>, vector<64x128xbf16>, vector<34x128xf32> -> vector<34x128xf32>
    %10 = arith.addf %5, %9 : vector<34x128xf32>
    %11 = vector.extract_strided_slice %1 {offsets = [2, 0], sizes = [34, 64], strides = [1, 1]} : vector<36x64xbf16> to vector<34x64xbf16>
    %c2 = arith.constant 2 : index
    %c0_8 = arith.constant 0 : index
    %c0_9 = arith.constant 0 : index
    %12 = vector.load %arg2[%c2, %c0_8, %c0_9] : memref<3x64x128xbf16, #tpu.memory_space<vmem>>, vector<1x64x128xbf16>
    %13 = vector.shape_cast %12 : vector<1x64x128xbf16> to vector<64x128xbf16>
    %cst_10 = arith.constant dense<0.000000e+00> : vector<34x128xf32>
    %14 = tpu.matmul %11, %13, %cst_10 {dimension_numbers = #tpu.dot_dimension_numbers<[1], [0], [0], [1], [0, 0, 1, 1], [], []>} : vector<34x64xbf16>, vector<64x128xbf16>, vector<34x128xf32> -> vector<34x128xf32>
    %15 = arith.addf %10, %14 : vector<34x128xf32>
    %16 = tpu.iota {dimensions = array<i32: 0>} : vector<34x1xi32>
    %c18_i32 = arith.constant 18 : i32
    %c0_i32 = arith.constant 0 : i32
    %17 = arith.cmpi eq, %c18_i32, %c0_i32 : i32
    %c1_i32 = arith.constant 1 : i32
    %18 = arith.select %17, %c1_i32, %c18_i32 : i32
    %19 = vector.broadcast %18 : i32 to vector<34x1xi32>
    %20 = arith.remsi %16, %19 : vector<34x1xi32>
    %c0_i32_11 = arith.constant 0 : i32
    %21 = vector.broadcast %c0_i32_11 : i32 to vector<34x1xi32>
    %22 = arith.cmpi ne, %20, %21 : vector<34x1xi32>
    %c0_i32_12 = arith.constant 0 : i32
    %23 = vector.broadcast %c0_i32_12 : i32 to vector<34x1xi32>
    %24 = arith.cmpi slt, %20, %23 : vector<34x1xi32>
    %c0_i32_13 = arith.constant 0 : i32
    %25 = arith.cmpi slt, %18, %c0_i32_13 : i32
    %26 = vector.broadcast %25 : i1 to vector<34x1xi1>
    %27 = vector.broadcast %26 : vector<34x1xi1> to vector<34x1xi1>
    %28 = arith.xori %24, %27 : vector<34x1xi1>
    %29 = arith.andi %28, %22 : vector<34x1xi1>
    %30 = vector.broadcast %18 : i32 to vector<34x1xi32>
    %31 = arith.addi %20, %30 : vector<34x1xi32>
    %32 = arith.select %29, %31, %20 : vector<34x1xi1>, vector<34x1xi32>
    %c16_i32 = arith.constant 16 : i32
    %33 = vector.broadcast %c16_i32 : i32 to vector<34x1xi32>
    %34 = arith.cmpi slt, %32, %33 : vector<34x1xi32>
    %c0_14 = arith.constant 0 : index
    %c0_15 = arith.constant 0 : index
    %35 = vector.load %arg3[%c0_14, %c0_15] : memref<1x128xf32, #tpu.memory_space<vmem>>, vector<1x128xf32>
    %36 = vector.broadcast %35 : vector<1x128xf32> to vector<34x128xf32>
    %37 = arith.addf %15, %36 : vector<34x128xf32>
    %cst_16 = arith.constant 0.000000e+00 : f32
    %38 = vector.broadcast %cst_16 : f32 to vector<34x128xf32>
    %39 = arith.maximumf %37, %38 : vector<34x128xf32>
    %cst_17 = arith.constant 0.000000e+00 : f32
    %40 = vector.shape_cast %34 : vector<34x1xi1> to vector<34x1xi1>
    %41 = vector.broadcast %40 : vector<34x1xi1> to vector<34x128xi1>
    %42 = vector.broadcast %cst_17 : f32 to vector<34x128xf32>
    %43 = arith.select %41, %39, %42 : vector<34x128xi1>, vector<34x128xf32>
    %cst_18 = arith.constant 0.000000e+00 : bf16
    %44 = vector.broadcast %cst_18 : bf16 to vector<1x128xbf16>
    %45 = arith.truncf %43 : vector<34x128xf32> to vector<34x128xbf16>
    %46 = tpu.concatenate %44, %45, %44 in 0 : vector<1x128xbf16>, vector<34x128xbf16>, vector<1x128xbf16> -> vector<36x128xbf16>
    %47 = vector.extract_strided_slice %46 {offsets = [0, 0], sizes = [34, 128], strides = [1, 1]} : vector<36x128xbf16> to vector<34x128xbf16>
    %c0_19 = arith.constant 0 : index
    %c0_20 = arith.constant 0 : index
    %c0_21 = arith.constant 0 : index
    %48 = vector.load %arg4[%c0_19, %c0_20, %c0_21] : memref<3x128x128xbf16, #tpu.memory_space<vmem>>, vector<1x128x128xbf16>
    %49 = vector.shape_cast %48 : vector<1x128x128xbf16> to vector<128x128xbf16>
    %cst_22 = arith.constant dense<0.000000e+00> : vector<34x128xf32>
    %50 = tpu.matmul %47, %49, %cst_22 {dimension_numbers = #tpu.dot_dimension_numbers<[1], [0], [0], [1], [0, 0, 1, 1], [], []>} : vector<34x128xbf16>, vector<128x128xbf16>, vector<34x128xf32> -> vector<34x128xf32>
    %51 = vector.extract_strided_slice %46 {offsets = [1, 0], sizes = [34, 128], strides = [1, 1]} : vector<36x128xbf16> to vector<34x128xbf16>
    %c1_23 = arith.constant 1 : index
    %c0_24 = arith.constant 0 : index
    %c0_25 = arith.constant 0 : index
    %52 = vector.load %arg4[%c1_23, %c0_24, %c0_25] : memref<3x128x128xbf16, #tpu.memory_space<vmem>>, vector<1x128x128xbf16>
    %53 = vector.shape_cast %52 : vector<1x128x128xbf16> to vector<128x128xbf16>
    %cst_26 = arith.constant dense<0.000000e+00> : vector<34x128xf32>
    %54 = tpu.matmul %51, %53, %cst_26 {dimension_numbers = #tpu.dot_dimension_numbers<[1], [0], [0], [1], [0, 0, 1, 1], [], []>} : vector<34x128xbf16>, vector<128x128xbf16>, vector<34x128xf32> -> vector<34x128xf32>
    %55 = arith.addf %50, %54 : vector<34x128xf32>
    %56 = vector.extract_strided_slice %46 {offsets = [2, 0], sizes = [34, 128], strides = [1, 1]} : vector<36x128xbf16> to vector<34x128xbf16>
    %c2_27 = arith.constant 2 : index
    %c0_28 = arith.constant 0 : index
    %c0_29 = arith.constant 0 : index
    %57 = vector.load %arg4[%c2_27, %c0_28, %c0_29] : memref<3x128x128xbf16, #tpu.memory_space<vmem>>, vector<1x128x128xbf16>
    %58 = vector.shape_cast %57 : vector<1x128x128xbf16> to vector<128x128xbf16>
    %cst_30 = arith.constant dense<0.000000e+00> : vector<34x128xf32>
    %59 = tpu.matmul %56, %58, %cst_30 {dimension_numbers = #tpu.dot_dimension_numbers<[1], [0], [0], [1], [0, 0, 1, 1], [], []>} : vector<34x128xbf16>, vector<128x128xbf16>, vector<34x128xf32> -> vector<34x128xf32>
    %60 = arith.addf %55, %59 : vector<34x128xf32>
    %c0_31 = arith.constant 0 : index
    %c0_32 = arith.constant 0 : index
    %61 = vector.load %arg5[%c0_31, %c0_32] : memref<1x128xf32, #tpu.memory_space<vmem>>, vector<1x128xf32>
    %62 = vector.broadcast %61 : vector<1x128xf32> to vector<34x128xf32>
    %63 = arith.addf %60, %62 : vector<34x128xf32>
    %cst_33 = arith.constant 0.000000e+00 : f32
    %64 = vector.broadcast %cst_33 : f32 to vector<34x128xf32>
    %65 = arith.maximumf %63, %64 : vector<34x128xf32>
    %c0_34 = arith.constant 0 : index
    %c0_35 = arith.constant 0 : index
    %c0_36 = arith.constant 0 : index
    %66 = vector.load %arg6[%c0_34, %c0_35, %c0_36] : memref<1x34x128xf32, #tpu.memory_space<vmem>>, vector<1x34x128xf32>
    %67 = vector.shape_cast %66 : vector<1x34x128xf32> to vector<34x128xf32>
    %68 = vector.shape_cast %65 : vector<34x128xf32> to vector<1x34x128xf32>
    tpu.vector_store %arg6[%c0_34, %c0_35, %c0_36], %68 {strides = array<i32>} : memref<1x34x128xf32, #tpu.memory_space<vmem>>, vector<1x34x128xf32>,
    return
  }
  func.func @transform_0(%arg0: i32) -> (i32, i32, i32) {
    %c0_i32 = arith.constant 0 : i32
    %c0_i32_0 = arith.constant 0 : i32
    %c0_i32_1 = arith.constant 0 : i32
    return %arg0, %c0_i32, %c0_i32_0 : i32, i32, i32
  }
  func.func @transform_1(%arg0: i32) -> (i32, i32, i32) {
    %c0_i32 = arith.constant 0 : i32
    %c0_i32_0 = arith.constant 0 : i32
    %c0_i32_1 = arith.constant 0 : i32
    %c0_i32_2 = arith.constant 0 : i32
    return %c0_i32, %c0_i32_0, %c0_i32_1 : i32, i32, i32
  }
  func.func @transform_2(%arg0: i32) -> (i32, i32) {
    %c0_i32 = arith.constant 0 : i32
    %c0_i32_0 = arith.constant 0 : i32
    %c0_i32_1 = arith.constant 0 : i32
    return %c0_i32, %c0_i32_0 : i32, i32
  }
  func.func @transform_3(%arg0: i32) -> (i32, i32, i32) {
    %c0_i32 = arith.constant 0 : i32
    %c0_i32_0 = arith.constant 0 : i32
    %c0_i32_1 = arith.constant 0 : i32
    %c0_i32_2 = arith.constant 0 : i32
    return %c0_i32, %c0_i32_0, %c0_i32_1 : i32, i32, i32
  }
  func.func @transform_4(%arg0: i32) -> (i32, i32) {
    %c0_i32 = arith.constant 0 : i32
    %c0_i32_0 = arith.constant 0 : i32
    %c0_i32_1 = arith.constant 0 : i32
    return %c0_i32, %c0_i32_0 : i32, i32
  }
  func.func @transform_5(%arg0: i32) -> (i32, i32, i32) {
    %c0_i32 = arith.constant 0 : i32
    %c0_i32_0 = arith.constant 0 : i32
    %c0_i32_1 = arith.constant 0 : i32
    return %arg0, %c0_i32, %c0_i32_0 : i32, i32, i32
  }
}

</mosaic_0001>

<llo_original>
// kernel: double_conv_apply.1
$region0: #{double_conv_apply.1}
  #allocation0 [shape = 'u32[]', space=smem, size = 0x4, offset = 0x4, fixed_abs, tag = 'smem constant byte address 0x4 - core index']
  #allocation1 [shape = 'u32[144,128]{1,0:T(1,128)}', space=vmem, size = 0x12000, scoped, tag = 'internal scratch']
  %s0 = inlined_call_operand.vmem [shape: bf16[1,36,64], index: 0, kind: input, shape index: {}]
  %s1 = inlined_call_operand.vmem [shape: bf16[3,64,128], index: 1, kind: input, shape index: {}]
  %s2 = inlined_call_operand.vmem [shape: f32[1,128], index: 2, kind: input, shape index: {}]
  %s3 = inlined_call_operand.vmem [shape: bf16[3,128,128], index: 3, kind: input, shape index: {}]
  %s4 = inlined_call_operand.vmem [shape: f32[1,128], index: 4, kind: input, shape index: {}]
  %s5 = inlined_call_operand.vmem [shape: f32[1,34,128], index: 5, kind: output, shape index: {}]
  %s6 = sld [smem:[#allocation0]]
  $region30: #{double_conv_apply.1} parent=0
    _
  %s8 = ssub.s32 1, %s6
  %s9 = scalar_select 0, %s8, %s6
  // Predicated region
  $region2: #{double_conv_apply.1} parent=0 // pred_check
    _
  $region3: #{double_conv_apply.1} parent=0 // pred_check_branch
    %11 = sbr.rel (0) target = $region5
  $region4: #{double_conv_apply.1} parent=0 // pred_region
    _
  $region5: #{double_conv_apply.1} parent=0 // pred_fallthru
    _
  // Predicated region
  $region6: #{double_conv_apply.1} parent=0 // pred_check
    _
  $region7: #{double_conv_apply.1} parent=0 // pred_check_branch
    %13 = sbr.rel (0) target = $region9
  $region8: #{double_conv_apply.1} parent=0 // pred_region
    _
  $region9: #{double_conv_apply.1} parent=0 // pred_fallthru
    _
  // Predicated region
  $region10: #{double_conv_apply.1} parent=0 // pred_check
    _
  $region11: #{double_conv_apply.1} parent=0 // pred_check_branch
    %15 = sbr.rel (0) target = $region13
  $region12: #{double_conv_apply.1} parent=0 // pred_region
    _
  $region13: #{double_conv_apply.1} parent=0 // pred_fallthru
    _
  // Predicated region
  $region14: #{double_conv_apply.1} parent=0 // pred_check
    _
  $region15: #{double_conv_apply.1} parent=0 // pred_check_branch
    %17 = sbr.rel (0) target = $region17
  $region16: #{double_conv_apply.1} parent=0 // pred_region
    _
  $region17: #{double_conv_apply.1} parent=0 // pred_fallthru
    _
  // Predicated region
  $region18: #{double_conv_apply.1} parent=0 // pred_check
    _
  $region19: #{double_conv_apply.1} parent=0 // pred_check_branch
    %19 = sbr.rel (0) target = $region21
  $region20: #{double_conv_apply.1} parent=0 // pred_region
    _
  $region21: #{double_conv_apply.1} parent=0 // pred_fallthru
    _
  %v21 = vld [vmem:[%s0] sm:$0xf]
  %v22 = vld [vmem:[%s0 + $0x4] sm:$0xf]
  %v23 = vld [vmem:[%s0 + $0x8] sm:$0xf]
  %v24 = vld [vmem:[%s0 + $0xc] sm:$0xf]
  %v25 = vld [vmem:[%s0 + $0x10] sm:$0x3]
  %v26 = vld [vmem:[%s1] sm:$0xf]
  %v27 = vld [vmem:[%s1 + $0x4] sm:$0xf]
  %v28 = vld [vmem:[%s1 + $0x8] sm:$0xf]
  %v29 = vld [vmem:[%s1 + $0xc] sm:$0xf]
  %v30 = vld [vmem:[%s1 + $0x10] sm:$0xf]
  %v31 = vld [vmem:[%s1 + $0x14] sm:$0xf]
  %v32 = vld [vmem:[%s1 + $0x18] sm:$0xf]
  %v33 = vld [vmem:[%s1 + $0x1c] sm:$0xf]
  %s34 = scalar_lea.vmem %s1, 32
  %v35 = vld [vmem:[%s34] sm:$0xf]
  %v36 = vld [vmem:[%s34 + $0x4] sm:$0xf]
  %v37 = vld [vmem:[%s34 + $0x8] sm:$0xf]
  %v38 = vld [vmem:[%s34 + $0xc] sm:$0xf]
  %v39 = vld [vmem:[%s34 + $0x10] sm:$0xf]
  %v40 = vld [vmem:[%s34 + $0x14] sm:$0xf]
  %v41 = vld [vmem:[%s34 + $0x18] sm:$0xf]
  %v42 = vld [vmem:[%s34 + $0x1c] sm:$0xf]
  %v48 = vunpack.c.l.b16 %v21
  %v49 = vunpack.c.l.b16 %v22
  %v50 = vunpack.c.l.b16 %v23
  %v51 = vunpack.c.l.b16 %v24
  %v52 = vunpack.c.l.b16 %v25
  %v53 = vpack.c.b16 %v49, %v48
  %v54 = vpack.c.b16 %v51, %v50
  %v55 = vpack.c.b16 %v52, %v52
  %vm56 = vsmask.f32 7424
  %v58 = vshrl.u32 %v53, 16
  %v60 = vshll.u32 %v53, 16
  %v62 = vrot.slane %v60, 1
  %v63 = vor.u32 %v58, %v62
  %v65 = vshll.u32 %v54, 16
  %v67 = vrot.slane %v65, 1
  %v68 = vsel %vm56, %v63, %v67
  %v69 = vshrl.u32 %v54, 16
  %v71 = vor.u32 %v69, %v67
  %v73 = vshll.u32 %v55, 16
  %v75 = vrot.slane %v73, 1
  %v76 = vsel %vm56, %v71, %v75
  %v77 = vshrl.u32 %v55, 16
  %v79 = vor.u32 %v77, %v75
  %v88 = vunpack.c.l.b16 %v35
  %v89 = vunpack.c.l.b16 %v36
  %v90 = vunpack.c.l.b16 %v37
  %v91 = vunpack.c.l.b16 %v38
  %v92 = vunpack.c.l.b16 %v39
  %v93 = vunpack.c.l.b16 %v40
  %v94 = vunpack.c.l.b16 %v41
  %v95 = vunpack.c.l.b16 %v42
  %v96 = vpack.c.b16 %v89, %v88
  %v97 = vpack.c.b16 %v91, %v90
  %v98 = vpack.c.b16 %v93, %v92
  %v99 = vpack.c.b16 %v95, %v94
  %vm104 = vcmask 523264
  %v106 = vsel %vm104, %v68, 0
  %v109 = vsel %vm104, %v76, 0
  %v112 = vsel %vm104, %v79, 0
  %114 = vmatprep.subr.bf16.mxu0 0
  %115 = vmatpush1.bf16.msra.mxu0 %v96
  %116 = vmatprep.subr.bf16.mxu0 0
  %117 = vmatpush1.bf16.msra.mxu0 %v97
  %118 = vmatprep.subr.bf16.mxu0 0
  %119 = vmatpush1.bf16.msra.mxu0 %v98
  %120 = vmatprep.subr.bf16.mxu0 0
  %121 = vmatpush1.bf16.msra.mxu0 %v99
  %122 = vmatprep.subr.bf16.mxu0 0
  %123 = vmatpush1.bf16.msra.mxu0 0
  %124 = vmatprep.subr.bf16.mxu0 0
  %125 = vmatpush1.bf16.msra.mxu0 0
  %126 = vmatprep.subr.bf16.mxu0 0
  %127 = vmatpush1.bf16.msra.mxu0 0
  %128 = vmatprep.subr.bf16.mxu0 0
  %129 = vmatpush1.bf16.msra.mxu0 0
  %130 = vmatprep.subr.bf16.mxu0 0
  %131 = vmatpush1.bf16.msra.mxu0 0
  %132 = vmatprep.subr.bf16.mxu0 0
  %133 = vmatpush1.bf16.msra.mxu0 0
  %134 = vmatprep.subr.bf16.mxu0 0
  %135 = vmatpush1.bf16.msra.mxu0 0
  %136 = vmatprep.subr.bf16.mxu0 0
  %137 = vmatpush1.bf16.msra.mxu0 0
  %138 = vmatprep.subr.bf16.mxu0 0
  %139 = vmatpush1.bf16.msra.mxu0 0
  %140 = vmatprep.subr.bf16.mxu0 0
  %141 = vmatpush1.bf16.msra.mxu0 0
  %142 = vmatprep.subr.bf16.mxu0 0
  %143 = vmatpush1.bf16.msra.mxu0 0
  %144 = vmatprep.subr.bf16.mxu0 0
  %145 = vmatpush1.bf16.msra.mxu0 0
  %146 = vmatprep.mubr.bf16.mxu0 0
  %147 = vmatmul.mubr.bf16.gmra.mrb[0].mxu0 %v106
  %v148 = vpop.f32.mrb[0].mxu0
  %v149 = vadd.f32 0.0, %v148
  %v150 = vpop.f32.mrb[0].mxu0
  %v151 = vpop.f32.mrb[0].mxu0
  %v152 = vadd.f32 0.0, %v151
  %v153 = vpop.f32.mrb[0].mxu0
  %154 = vmatprep.mubr.bf16.mxu0 0
  %155 = vmatmul.mubr.bf16.gmra.mrb[0].mxu0 %v109
  %v156 = vpop.f32.mrb[0].mxu0
  %v157 = vadd.f32 0.0, %v156
  %v158 = vpop.f32.mrb[0].mxu0
  %v159 = vpop.f32.mrb[0].mxu0
  %v160 = vadd.f32 0.0, %v159
  %v161 = vpop.f32.mrb[0].mxu0
  %162 = vmatprep.mubr.bf16.mxu0 0
  %163 = vmatmul.mubr.bf16.gmra.mrb[0].mxu0 %v112
  %v164 = vpop.f32.mrb[0].mxu0
  %v165 = vadd.f32 0.0, %v164
  %v166 = vpop.f32.mrb[0].mxu0
  %v167 = vpop.f32.mrb[0].mxu0
  %v168 = vpop.f32.mrb[0].mxu0
  %169 = vdwg.mxu0
  %v178 = vunpack.c.l.b16 %v26
  %v179 = vunpack.c.l.b16 %v27
  %v180 = vunpack.c.l.b16 %v28
  %v181 = vunpack.c.l.b16 %v29
  %v182 = vunpack.c.l.b16 %v30
  %v183 = vunpack.c.l.b16 %v31
  %v184 = vunpack.c.l.b16 %v32
  %v185 = vunpack.c.l.b16 %v33
  %v186 = vpack.c.b16 %v179, %v178
  %v187 = vpack.c.b16 %v181, %v180
  %v188 = vpack.c.b16 %v183, %v182
  %v189 = vpack.c.b16 %v185, %v184
  %v194 = vsel %vm104, %v53, 0
  %v196 = vsel %vm104, %v54, 0
  %v198 = vsel %vm104, %v55, 0
  %200 = vmatprep.subr.bf16.mxu0 0
  %201 = vmatpush1.bf16.msra.mxu0 %v186
  %202 = vmatprep.subr.bf16.mxu0 0
  %203 = vmatpush1.bf16.msra.mxu0 %v187
  %204 = vmatprep.subr.bf16.mxu0 0
  %205 = vmatpush1.bf16.msra.mxu0 %v188
  %206 = vmatprep.subr.bf16.mxu0 0
  %207 = vmatpush1.bf16.msra.mxu0 %v189
  %208 = vmatprep.subr.bf16.mxu0 0
  %209 = vmatpush1.bf16.msra.mxu0 0
  %210 = vmatprep.subr.bf16.mxu0 0
  %211 = vmatpush1.bf16.msra.mxu0 0
  %212 = vmatprep.subr.bf16.mxu0 0
  %213 = vmatpush1.bf16.msra.mxu0 0
  %214 = vmatprep.subr.bf16.mxu0 0
  %215 = vmatpush1.bf16.msra.mxu0 0
  %216 = vmatprep.subr.bf16.mxu0 0
  %217 = vmatpush1.bf16.msra.mxu0 0
  %218 = vmatprep.subr.bf16.mxu0 0
  %219 = vmatpush1.bf16.msra.mxu0 0
  %220 = vmatprep.subr.bf16.mxu0 0
  %221 = vmatpush1.bf16.msra.mxu0 0
  %222 = vmatprep.subr.bf16.mxu0 0
  %223 = vmatpush1.bf16.msra.mxu0 0
  %224 = vmatprep.subr.bf16.mxu0 0
  %225 = vmatpush1.bf16.msra.mxu0 0
  %226 = vmatprep.subr.bf16.mxu0 0
  %227 = vmatpush1.bf16.msra.mxu0 0
  %228 = vmatprep.subr.bf16.mxu0 0
  %229 = vmatpush1.bf16.msra.mxu0 0
  %230 = vmatprep.subr.bf16.mxu0 0
  %231 = vmatpush1.bf16.msra.mxu0 0
  %232 = vmatprep.mubr.bf16.mxu0 0
  %233 = vmatmul.mubr.bf16.gmra.mrb[0].mxu0 %v194
  %v234 = vpop.f32.mrb[0].mxu0
  %v235 = vadd.f32 %v149, %v234
  %v236 = vpop.f32.mrb[0].mxu0
  %v237 = vpop.f32.mrb[0].mxu0
  %v238 = vadd.f32 %v152, %v237
  %v239 = vpop.f32.mrb[0].mxu0
  %240 = vmatprep.mubr.bf16.mxu0 0
  %241 = vmatmul.mubr.bf16.gmra.mrb[0].mxu0 %v196
  %v242 = vpop.f32.mrb[0].mxu0
  %v243 = vadd.f32 %v157, %v242
  %v244 = vpop.f32.mrb[0].mxu0
  %v245 = vpop.f32.mrb[0].mxu0
  %v246 = vadd.f32 %v160, %v245
  %v247 = vpop.f32.mrb[0].mxu0
  %248 = vmatprep.mubr.bf16.mxu0 0
  %249 = vmatmul.mubr.bf16.gmra.mrb[0].mxu0 %v198
  %v250 = vpop.f32.mrb[0].mxu0
  %v251 = vadd.f32 %v165, %v250
  %v252 = vpop.f32.mrb[0].mxu0
  %v253 = vpop.f32.mrb[0].mxu0
  %v254 = vpop.f32.mrb[0].mxu0
  %255 = vdwg.mxu0
  %s256 = scalar_lea.vmem %s1, 64
  %v257 = vld [vmem:[%s256] sm:$0xf]
  %v258 = vld [vmem:[%s256 + $0x4] sm:$0xf]
  %v259 = vld [vmem:[%s256 + $0x8] sm:$0xf]
  %v260 = vld [vmem:[%s256 + $0xc] sm:$0xf]
  %v261 = vld [vmem:[%s256 + $0x10] sm:$0xf]
  %v262 = vld [vmem:[%s256 + $0x14] sm:$0xf]
  %v263 = vld [vmem:[%s256 + $0x18] sm:$0xf]
  %v264 = vld [vmem:[%s256 + $0x1c] sm:$0xf]
  %vm265 = vcmask 1046528
  %v266 = vrot.slane %v53, 1
  %v267 = vrot.slane %v54, 1
  %v268 = vsel %vm265, %v266, %v267
  %v269 = vrot.slane %v55, 1
  %v270 = vsel %vm265, %v267, %v269
  %v279 = vunpack.c.l.b16 %v257
  %v280 = vunpack.c.l.b16 %v258
  %v281 = vunpack.c.l.b16 %v259
  %v282 = vunpack.c.l.b16 %v260
  %v283 = vunpack.c.l.b16 %v261
  %v284 = vunpack.c.l.b16 %v262
  %v285 = vunpack.c.l.b16 %v263
  %v286 = vunpack.c.l.b16 %v264
  %v287 = vpack.c.b16 %v280, %v279
  %v288 = vpack.c.b16 %v282, %v281
  %v289 = vpack.c.b16 %v284, %v283
  %v290 = vpack.c.b16 %v286, %v285
  %v296 = vsel %vm104, %v268, 0
  %v299 = vsel %vm104, %v270, 0
  %v302 = vsel %vm104, %v269, 0
  %304 = vmatprep.subr.bf16.mxu0 0
  %305 = vmatpush1.bf16.msra.mxu0 %v287
  %306 = vmatprep.subr.bf16.mxu0 0
  %307 = vmatpush1.bf16.msra.mxu0 %v288
  %308 = vmatprep.subr.bf16.mxu0 0
  %309 = vmatpush1.bf16.msra.mxu0 %v289
  %310 = vmatprep.subr.bf16.mxu0 0
  %311 = vmatpush1.bf16.msra.mxu0 %v290
  %312 = vmatprep.subr.bf16.mxu0 0
  %313 = vmatpush1.bf16.msra.mxu0 0
  %314 = vmatprep.subr.bf16.mxu0 0
  %315 = vmatpush1.bf16.msra.mxu0 0
  %316 = vmatprep.subr.bf16.mxu0 0
  %317 = vmatpush1.bf16.msra.mxu0 0
  %318 = vmatprep.subr.bf16.mxu0 0
  %319 = vmatpush1.bf16.msra.mxu0 0
  %320 = vmatprep.subr.bf16.mxu0 0
  %321 = vmatpush1.bf16.msra.mxu0 0
  %322 = vmatprep.subr.bf16.mxu0 0
  %323 = vmatpush1.bf16.msra.mxu0 0
  %324 = vmatprep.subr.bf16.mxu0 0
  %325 = vmatpush1.bf16.msra.mxu0 0
  %326 = vmatprep.subr.bf16.mxu0 0
  %327 = vmatpush1.bf16.msra.mxu0 0
  %328 = vmatprep.subr.bf16.mxu0 0
  %329 = vmatpush1.bf16.msra.mxu0 0
  %330 = vmatprep.subr.bf16.mxu0 0
  %331 = vmatpush1.bf16.msra.mxu0 0
  %332 = vmatprep.subr.bf16.mxu0 0
  %333 = vmatpush1.bf16.msra.mxu0 0
  %334 = vmatprep.subr.bf16.mxu0 0
  %335 = vmatpush1.bf16.msra.mxu0 0
  %336 = vmatprep.mubr.bf16.mxu0 0
  %337 = vmatmul.mubr.bf16.gmra.mrb[0].mxu0 %v296
  %v338 = vpop.f32.mrb[0].mxu0
  %v339 = vadd.f32 0.0, %v338
  %v340 = vpop.f32.mrb[0].mxu0
  %v341 = vpop.f32.mrb[0].mxu0
  %v342 = vadd.f32 0.0, %v341
  %v343 = vpop.f32.mrb[0].mxu0
  %344 = vmatprep.mubr.bf16.mxu0 0
  %345 = vmatmul.mubr.bf16.gmra.mrb[0].mxu0 %v299
  %v346 = vpop.f32.mrb[0].mxu0
  %v347 = vadd.f32 0.0, %v346
  %v348 = vpop.f32.mrb[0].mxu0
  %v349 = vpop.f32.mrb[0].mxu0
  %v350 = vadd.f32 0.0, %v349
  %v351 = vpop.f32.mrb[0].mxu0
  %352 = vmatprep.mubr.bf16.mxu0 0
  %353 = vmatmul.mubr.bf16.gmra.mrb[0].mxu0 %v302
  %v354 = vpop.f32.mrb[0].mxu0
  %v355 = vadd.f32 0.0, %v354
  %v356 = vpop.f32.mrb[0].mxu0
  %v357 = vpop.f32.mrb[0].mxu0
  %v358 = vpop.f32.mrb[0].mxu0
  %359 = vdwg.mxu0
  %v360 = vadd.f32 %v235, %v339
  %v361 = vadd.f32 %v238, %v342
  %v362 = vadd.f32 %v243, %v347
  %v363 = vadd.f32 %v246, %v350
  %v364 = vadd.f32 %v251, %v355
  %v365 = vlaneseq
  %v366 = vshrl.u32 %v365, 7
  %v367 = vadd.s32 %v366, 8
  %v368 = vadd.s32 %v366, 16
  %v369 = vadd.s32 %v366, 24
  %v370 = vadd.s32 %v366, 32
  %vm371 = vcmp.lt.s32.totalorder %v366, 0
  %v372 = vsub.s32 0, %v366
  %v373 = vsel %vm371, %v372, %v366
  %v374 = vmul.u32.u64.compose %v373, 3817748708
  %v375 = vextract.low.u32 %v374
  %v376 = vextract.high.u32 %v374
  %v377 = vshrl.u32 %v376, 4
  %v378 = vmul.u32 %v377, 18
  %v379 = vsub.s32 %v373, %v378
  %v380 = vsub.s32 0, %v379
  %v381 = vsel %vm371, %v380, %v379
  %vm382 = vcmp.lt.s32.totalorder %v367, 0
  %v383 = vsub.s32 0, %v367
  %v384 = vsel %vm382, %v383, %v367
  %v385 = vmul.u32.u64.compose %v384, 3817748708
  %v386 = vextract.low.u32 %v385
  %v387 = vextract.high.u32 %v385
  %v388 = vshrl.u32 %v387, 4
  %v389 = vmul.u32 %v388, 18
  %v390 = vsub.s32 %v384, %v389
  %v391 = vsub.s32 0, %v390
  %v392 = vsel %vm382, %v391, %v390
  %vm393 = vcmp.lt.s32.totalorder %v368, 0
  %v394 = vsub.s32 0, %v368
  %v395 = vsel %vm393, %v394, %v368
  %v396 = vmul.u32.u64.compose %v395, 3817748708
  %v397 = vextract.low.u32 %v396
  %v398 = vextract.high.u32 %v396
  %v399 = vshrl.u32 %v398, 4
  %v400 = vmul.u32 %v399, 18
  %v401 = vsub.s32 %v395, %v400
  %v402 = vsub.s32 0, %v401
  %v403 = vsel %vm393, %v402, %v401
  %vm404 = vcmp.lt.s32.totalorder %v369, 0
  %v405 = vsub.s32 0, %v369
  %v406 = vsel %vm404, %v405, %v369
  %v407 = vmul.u32.u64.compose %v406, 3817748708
  %v408 = vextract.low.u32 %v407
  %v409 = vextract.high.u32 %v407
  %v410 = vshrl.u32 %v409, 4
  %v411 = vmul.u32 %v410, 18
  %v412 = vsub.s32 %v406, %v411
  %v413 = vsub.s32 0, %v412
  %v414 = vsel %vm404, %v413, %v412
  %vm415 = vcmp.lt.s32.totalorder %v370, 0
  %v416 = vsub.s32 0, %v370
  %v417 = vsel %vm415, %v416, %v370
  %v418 = vmul.u32.u64.compose %v417, 3817748708
  %v419 = vextract.low.u32 %v418
  %v420 = vextract.high.u32 %v418
  %v421 = vshrl.u32 %v420, 4
  %v422 = vmul.u32 %v421, 18
  %v423 = vsub.s32 %v417, %v422
  %v424 = vsub.s32 0, %v423
  %v425 = vsel %vm415, %v424, %v423
  %vm426 = vcmp.ne.s32.totalorder %v381, 0
  %vm427 = vcmp.ne.s32.totalorder %v392, 0
  %vm428 = vcmp.ne.s32.totalorder %v403, 0
  %vm429 = vcmp.ne.s32.totalorder %v414, 0
  %vm430 = vcmp.ne.s32.totalorder %v425, 0
  %vm431 = vcmp.lt.s32.totalorder %v381, 0
  %vm432 = vcmp.lt.s32.totalorder %v392, 0
  %vm433 = vcmp.lt.s32.totalorder %v403, 0
  %vm434 = vcmp.lt.s32.totalorder %v414, 0
  %vm435 = vcmp.lt.s32.totalorder %v425, 0
  %vm436 = vmand %vm431, %vm426
  %vm437 = vmand %vm432, %vm427
  %vm438 = vmand %vm433, %vm428
  %vm439 = vmand %vm434, %vm429
  %vm440 = vmand %vm435, %vm430
  %v441 = vadd.s32 %v381, 18
  %v442 = vadd.s32 %v392, 18
  %v443 = vadd.s32 %v403, 18
  %v444 = vadd.s32 %v414, 18
  %v445 = vadd.s32 %v425, 18
  %v446 = vsel %vm436, %v441, %v381
  %v447 = vsel %vm437, %v442, %v392
  %v448 = vsel %vm438, %v443, %v403
  %v449 = vsel %vm439, %v444, %v414
  %v450 = vsel %vm440, %v445, %v425
  %vm451 = vcmp.lt.s32.totalorder %v446, 16
  %vm452 = vcmp.lt.s32.totalorder %v447, 16
  %vm453 = vcmp.lt.s32.totalorder %v448, 16
  %vm454 = vcmp.lt.s32.totalorder %v449, 16
  %vm455 = vcmp.lt.s32.totalorder %v450, 16
  %v456 = vld [vmem:[%s2] sm:$0x1]
  %v458 = vlaneseq
  %v459 = vshrl.u32 %v458, 7
  %v460 = vsub.s32 0, %v459
  %v461 = vrot.slane %v456, %v460
  %v463 = vadd.f32 %v360, %v461
  %v464 = vadd.f32 %v361, %v461
  %v465 = vadd.f32 %v362, %v461
  %v466 = vadd.f32 %v363, %v461
  %v467 = vadd.f32 %v364, %v461
  %v468 = vmax.f32 %v463, 0.0
  %v469 = vmax.f32 %v464, 0.0
  %v470 = vmax.f32 %v465, 0.0
  %v471 = vmax.f32 %v466, 0.0
  %v472 = vmax.f32 %v467, 0.0
  %v473 = vsel %vm451, 1, 0
  %v474 = vsel %vm452, 1, 0
  %v475 = vsel %vm453, 1, 0
  %v476 = vsel %vm454, 1, 0
  %v477 = vsel %vm455, 1, 0
  %vm478 = vcmp.eq.s32.totalorder %v473, 1
  %vm479 = vcmp.eq.s32.totalorder %v474, 1
  %vm480 = vcmp.eq.s32.totalorder %v475, 1
  %vm481 = vcmp.eq.s32.totalorder %v476, 1
  %vm482 = vcmp.eq.s32.totalorder %v477, 1
  %v483 = vsel %vm478, %v468, 0.0
  %v484 = vsel %vm479, %v469, 0.0
  %v485 = vsel %vm480, %v470, 0.0
  %v486 = vsel %vm481, %v471, 0.0
  %v487 = vsel %vm482, %v472, 0.0
  %v488 = vpack.c.bf16 %v484, %v483
  %v489 = vpack.c.bf16 %v486, %v485
  %v490 = vpack.c.bf16 %v487, %v487
  %vm491 = vsmask.f32 256
  %v493 = vshrl.u32 %v488, 16
  %v495 = vrot.slane %v493, 7
  %v496 = vshll.u32 %v488, 16
  %v498 = vor.u32 %v495, %v496
  %v500 = vshrl.u32 %v489, 16
  %v502 = vrot.slane %v500, 7
  %v503 = vshll.u32 %v489, 16
  %v505 = vor.u32 %v502, %v503
  %v506 = vsel %vm491, %v495, %v505
  %v508 = vshrl.u32 %v490, 16
  %v510 = vrot.slane %v508, 7
  %v511 = vshll.u32 %v490, 16
  %v513 = vor.u32 %v510, %v511
  %v514 = vsel %vm491, %v502, %v513
  %vm518 = vcmask 1040384
  %vm519 = vmand %vm518, %vm491
  %v520 = vsel %vm519, 0, %v498
  %vm521 = vcmask 1041408
  %vm522 = vsmask.f32 1280
  %vm523 = vmand %vm521, %vm522
  %v524 = vsel %vm523, %v514, 0
  %v525 = vld [vmem:[%s3] sm:$0xf]
  %v526 = vld [vmem:[%s3 + $0x4] sm:$0xf]
  %v527 = vld [vmem:[%s3 + $0x8] sm:$0xf]
  %v528 = vld [vmem:[%s3 + $0xc] sm:$0xf]
  %v529 = vld [vmem:[%s3 + $0x10] sm:$0xf]
  %v530 = vld [vmem:[%s3 + $0x14] sm:$0xf]
  %v531 = vld [vmem:[%s3 + $0x18] sm:$0xf]
  %v532 = vld [vmem:[%s3 + $0x1c] sm:$0xf]
  %v533 = vld [vmem:[%s3 + $0x20] sm:$0xf]
  %v534 = vld [vmem:[%s3 + $0x24] sm:$0xf]
  %v535 = vld [vmem:[%s3 + $0x28] sm:$0xf]
  %v536 = vld [vmem:[%s3 + $0x2c] sm:$0xf]
  %v537 = vld [vmem:[%s3 + $0x30] sm:$0xf]
  %v538 = vld [vmem:[%s3 + $0x34] sm:$0xf]
  %v539 = vld [vmem:[%s3 + $0x38] sm:$0xf]
  %v540 = vld [vmem:[%s3 + $0x3c] sm:$0xf]
  %s541 = scalar_lea.vmem %s3, 64
  %v542 = vld [vmem:[%s541] sm:$0xf]
  %v543 = vld [vmem:[%s541 + $0x4] sm:$0xf]
  %v544 = vld [vmem:[%s541 + $0x8] sm:$0xf]
  %v545 = vld [vmem:[%s541 + $0xc] sm:$0xf]
  %v546 = vld [vmem:[%s541 + $0x10] sm:$0xf]
  %v547 = vld [vmem:[%s541 + $0x14] sm:$0xf]
  %v548 = vld [vmem:[%s541 + $0x18] sm:$0xf]
  %v549 = vld [vmem:[%s541 + $0x1c] sm:$0xf]
  %v550 = vld [vmem:[%s541 + $0x20] sm:$0xf]
  %v551 = vld [vmem:[%s541 + $0x24] sm:$0xf]
  %v552 = vld [vmem:[%s541 + $0x28] sm:$0xf]
  %v553 = vld [vmem:[%s541 + $0x2c] sm:$0xf]
  %v554 = vld [vmem:[%s541 + $0x30] sm:$0xf]
  %v555 = vld [vmem:[%s541 + $0x34] sm:$0xf]
  %v556 = vld [vmem:[%s541 + $0x38] sm:$0xf]
  %v557 = vld [vmem:[%s541 + $0x3c] sm:$0xf]
  %v559 = vshrl.u32 %v520, 16
  %v561 = vshll.u32 %v520, 16
  %v563 = vrot.slane %v561, 1
  %v564 = vor.u32 %v559, %v563
  %v566 = vshll.u32 %v506, 16
  %v568 = vrot.slane %v566, 1
  %v569 = vsel %vm56, %v564, %v568
  %v570 = vshrl.u32 %v506, 16
  %v572 = vor.u32 %v570, %v568
  %v574 = vshll.u32 %v524, 16
  %v576 = vrot.slane %v574, 1
  %v577 = vsel %vm56, %v572, %v576
  %v578 = vshrl.u32 %v524, 16
  %v580 = vor.u32 %v578, %v576
  %v600 = vunpack.c.l.b16 %v542
  %v601 = vunpack.c.l.b16 %v543
  %v602 = vunpack.c.l.b16 %v544
  %v603 = vunpack.c.l.b16 %v545
  %v604 = vunpack.c.l.b16 %v546
  %v605 = vunpack.c.l.b16 %v547
  %v606 = vunpack.c.l.b16 %v548
  %v607 = vunpack.c.l.b16 %v549
  %v608 = vunpack.c.l.b16 %v550
  %v609 = vunpack.c.l.b16 %v551
  %v610 = vunpack.c.l.b16 %v552
  %v611 = vunpack.c.l.b16 %v553
  %v612 = vunpack.c.l.b16 %v554
  %v613 = vunpack.c.l.b16 %v555
  %v614 = vunpack.c.l.b16 %v556
  %v615 = vunpack.c.l.b16 %v557
  %v616 = vpack.c.b16 %v601, %v600
  %v617 = vpack.c.b16 %v603, %v602
  %v618 = vpack.c.b16 %v605, %v604
  %v619 = vpack.c.b16 %v607, %v606
  %v620 = vpack.c.b16 %v609, %v608
  %v621 = vpack.c.b16 %v611, %v610
  %v622 = vpack.c.b16 %v613, %v612
  %v623 = vpack.c.b16 %v615, %v614
  %632 = vmatprep.subr.bf16.mxu0 0
  %633 = vmatpush1.bf16.msra.mxu0 %v616
  %634 = vmatprep.subr.bf16.mxu0 0
  %635 = vmatpush1.bf16.msra.mxu0 %v617
  %636 = vmatprep.subr.bf16.mxu0 0
  %637 = vmatpush1.bf16.msra.mxu0 %v618
  %638 = vmatprep.subr.bf16.mxu0 0
  %639 = vmatpush1.bf16.msra.mxu0 %v619
  %640 = vmatprep.subr.bf16.mxu0 0
  %641 = vmatpush1.bf16.msra.mxu0 %v620
  %642 = vmatprep.subr.bf16.mxu0 0
  %643 = vmatpush1.bf16.msra.mxu0 %v621
  %644 = vmatprep.subr.bf16.mxu0 0
  %645 = vmatpush1.bf16.msra.mxu0 %v622
  %646 = vmatprep.subr.bf16.mxu0 0
  %647 = vmatpush1.bf16.msra.mxu0 %v623
  %648 = vmatprep.subr.bf16.mxu0 0
  %649 = vmatpush1.bf16.msra.mxu0 0
  %650 = vmatprep.subr.bf16.mxu0 0
  %651 = vmatpush1.bf16.msra.mxu0 0
  %652 = vmatprep.subr.bf16.mxu0 0
  %653 = vmatpush1.bf16.msra.mxu0 0
  %654 = vmatprep.subr.bf16.mxu0 0
  %655 = vmatpush1.bf16.msra.mxu0 0
  %656 = vmatprep.subr.bf16.mxu0 0
  %657 = vmatpush1.bf16.msra.mxu0 0
  %658 = vmatprep.subr.bf16.mxu0 0
  %659 = vmatpush1.bf16.msra.mxu0 0
  %660 = vmatprep.subr.bf16.mxu0 0
  %661 = vmatpush1.bf16.msra.mxu0 0
  %662 = vmatprep.subr.bf16.mxu0 0
  %663 = vmatpush1.bf16.msra.mxu0 0
  %664 = vmatprep.mubr.bf16.mxu0 0
  %665 = vmatmul.mubr.bf16.gmra.mrb[0].mxu0 %v569
  %v666 = vpop.f32.mrb[0].mxu0
  %v667 = vadd.f32 0.0, %v666
  %v668 = vpop.f32.mrb[0].mxu0
  %v669 = vpop.f32.mrb[0].mxu0
  %v670 = vadd.f32 0.0, %v669
  %v671 = vpop.f32.mrb[0].mxu0
  %672 = vmatprep.mubr.bf16.mxu0 0
  %673 = vmatmul.mubr.bf16.gmra.mrb[0].mxu0 %v577
  %v674 = vpop.f32.mrb[0].mxu0
  %v675 = vadd.f32 0.0, %v674
  %v676 = vpop.f32.mrb[0].mxu0
  %v677 = vpop.f32.mrb[0].mxu0
  %v678 = vadd.f32 0.0, %v677
  %v679 = vpop.f32.mrb[0].mxu0
  %680 = vmatprep.mubr.bf16.mxu0 0
  %681 = vmatmul.mubr.bf16.gmra.mrb[0].mxu0 %v580
  %v682 = vpop.f32.mrb[0].mxu0
  %v683 = vadd.f32 0.0, %v682
  %v684 = vpop.f32.mrb[0].mxu0
  %v685 = vpop.f32.mrb[0].mxu0
  %v686 = vpop.f32.mrb[0].mxu0
  %687 = vdwg.mxu0
  %v704 = vunpack.c.l.b16 %v525
  %v705 = vunpack.c.l.b16 %v526
  %v706 = vunpack.c.l.b16 %v527
  %v707 = vunpack.c.l.b16 %v528
  %v708 = vunpack.c.l.b16 %v529
  %v709 = vunpack.c.l.b16 %v530
  %v710 = vunpack.c.l.b16 %v531
  %v711 = vunpack.c.l.b16 %v532
  %v712 = vunpack.c.l.b16 %v533
  %v713 = vunpack.c.l.b16 %v534
  %v714 = vunpack.c.l.b16 %v535
  %v715 = vunpack.c.l.b16 %v536
  %v716 = vunpack.c.l.b16 %v537
  %v717 = vunpack.c.l.b16 %v538
  %v718 = vunpack.c.l.b16 %v539
  %v719 = vunpack.c.l.b16 %v540
  %v720 = vpack.c.b16 %v705, %v704
  %v721 = vpack.c.b16 %v707, %v706
  %v722 = vpack.c.b16 %v709, %v708
  %v723 = vpack.c.b16 %v711, %v710
  %v724 = vpack.c.b16 %v713, %v712
  %v725 = vpack.c.b16 %v715, %v714
  %v726 = vpack.c.b16 %v717, %v716
  %v727 = vpack.c.b16 %v719, %v718
  %736 = vmatprep.subr.bf16.mxu0 0
  %737 = vmatpush1.bf16.msra.mxu0 %v720
  %738 = vmatprep.subr.bf16.mxu0 0
  %739 = vmatpush1.bf16.msra.mxu0 %v721
  %740 = vmatprep.subr.bf16.mxu0 0
  %741 = vmatpush1.bf16.msra.mxu0 %v722
  %742 = vmatprep.subr.bf16.mxu0 0
  %743 = vmatpush1.bf16.msra.mxu0 %v723
  %744 = vmatprep.subr.bf16.mxu0 0
  %745 = vmatpush1.bf16.msra.mxu0 %v724
  %746 = vmatprep.subr.bf16.mxu0 0
  %747 = vmatpush1.bf16.msra.mxu0 %v725
  %748 = vmatprep.subr.bf16.mxu0 0
  %749 = vmatpush1.bf16.msra.mxu0 %v726
  %750 = vmatprep.subr.bf16.mxu0 0
  %751 = vmatpush1.bf16.msra.mxu0 %v727
  %752 = vmatprep.subr.bf16.mxu0 0
  %753 = vmatpush1.bf16.msra.mxu0 0
  %754 = vmatprep.subr.bf16.mxu0 0
  %755 = vmatpush1.bf16.msra.mxu0 0
  %756 = vmatprep.subr.bf16.mxu0 0
  %757 = vmatpush1.bf16.msra.mxu0 0
  %758 = vmatprep.subr.bf16.mxu0 0
  %759 = vmatpush1.bf16.msra.mxu0 0
  %760 = vmatprep.subr.bf16.mxu0 0
  %761 = vmatpush1.bf16.msra.mxu0 0
  %762 = vmatprep.subr.bf16.mxu0 0
  %763 = vmatpush1.bf16.msra.mxu0 0
  %764 = vmatprep.subr.bf16.mxu0 0
  %765 = vmatpush1.bf16.msra.mxu0 0
  %766 = vmatprep.subr.bf16.mxu0 0
  %767 = vmatpush1.bf16.msra.mxu0 0
  %768 = vmatprep.mubr.bf16.mxu0 0
  %769 = vmatmul.mubr.bf16.gmra.mrb[0].mxu0 %v520
  %v770 = vpop.f32.mrb[0].mxu0
  %v771 = vadd.f32 %v667, %v770
  %v772 = vpop.f32.mrb[0].mxu0
  %v773 = vpop.f32.mrb[0].mxu0
  %v774 = vadd.f32 %v670, %v773
  %v775 = vpop.f32.mrb[0].mxu0
  %776 = vmatprep.mubr.bf16.mxu0 0
  %777 = vmatmul.mubr.bf16.gmra.mrb[0].mxu0 %v506
  %v778 = vpop.f32.mrb[0].mxu0
  %v779 = vadd.f32 %v675, %v778
  %v780 = vpop.f32.mrb[0].mxu0
  %v781 = vpop.f32.mrb[0].mxu0
  %v782 = vadd.f32 %v678, %v781
  %v783 = vpop.f32.mrb[0].mxu0
  %784 = vmatprep.mubr.bf16.mxu0 0
  %785 = vmatmul.mubr.bf16.gmra.mrb[0].mxu0 %v524
  %v786 = vpop.f32.mrb[0].mxu0
  %v787 = vadd.f32 %v683, %v786
  %v788 = vpop.f32.mrb[0].mxu0
  %v789 = vpop.f32.mrb[0].mxu0
  %v790 = vpop.f32.mrb[0].mxu0
  %791 = vdwg.mxu0
  %s792 = scalar_lea.vmem %s3, 128
  %v793 = vld [vmem:[%s792] sm:$0xf]
  %v794 = vld [vmem:[%s792 + $0x4] sm:$0xf]
  %v795 = vld [vmem:[%s792 + $0x8] sm:$0xf]
  %v796 = vld [vmem:[%s792 + $0xc] sm:$0xf]
  %v797 = vld [vmem:[%s792 + $0x10] sm:$0xf]
  %v798 = vld [vmem:[%s792 + $0x14] sm:$0xf]
  %v799 = vld [vmem:[%s792 + $0x18] sm:$0xf]
  %v800 = vld [vmem:[%s792 + $0x1c] sm:$0xf]
  %v801 = vld [vmem:[%s792 + $0x20] sm:$0xf]
  %v802 = vld [vmem:[%s792 + $0x24] sm:$0xf]
  %v803 = vld [vmem:[%s792 + $0x28] sm:$0xf]
  %v804 = vld [vmem:[%s792 + $0x2c] sm:$0xf]
  %v805 = vld [vmem:[%s792 + $0x30] sm:$0xf]
  %v806 = vld [vmem:[%s792 + $0x34] sm:$0xf]
  %v807 = vld [vmem:[%s792 + $0x38] sm:$0xf]
  %v808 = vld [vmem:[%s792 + $0x3c] sm:$0xf]
  %v811 = vrot.slane %v520, 1
  %v812 = vrot.slane %v506, 1
  %v813 = vsel %vm265, %v811, %v812
  %v814 = vrot.slane %v524, 1
  %v815 = vsel %vm265, %v812, %v814
  %v835 = vunpack.c.l.b16 %v793
  %v836 = vunpack.c.l.b16 %v794
  %v837 = vunpack.c.l.b16 %v795
  %v838 = vunpack.c.l.b16 %v796
  %v839 = vunpack.c.l.b16 %v797
  %v840 = vunpack.c.l.b16 %v798
  %v841 = vunpack.c.l.b16 %v799
  %v842 = vunpack.c.l.b16 %v800
  %v843 = vunpack.c.l.b16 %v801
  %v844 = vunpack.c.l.b16 %v802
  %v845 = vunpack.c.l.b16 %v803
  %v846 = vunpack.c.l.b16 %v804
  %v847 = vunpack.c.l.b16 %v805
  %v848 = vunpack.c.l.b16 %v806
  %v849 = vunpack.c.l.b16 %v807
  %v850 = vunpack.c.l.b16 %v808
  %v851 = vpack.c.b16 %v836, %v835
  %v852 = vpack.c.b16 %v838, %v837
  %v853 = vpack.c.b16 %v840, %v839
  %v854 = vpack.c.b16 %v842, %v841
  %v855 = vpack.c.b16 %v844, %v843
  %v856 = vpack.c.b16 %v846, %v845
  %v857 = vpack.c.b16 %v848, %v847
  %v858 = vpack.c.b16 %v850, %v849
  %867 = vmatprep.subr.bf16.mxu0 0
  %868 = vmatpush1.bf16.msra.mxu0 %v851
  %869 = vmatprep.subr.bf16.mxu0 0
  %870 = vmatpush1.bf16.msra.mxu0 %v852
  %871 = vmatprep.subr.bf16.mxu0 0
  %872 = vmatpush1.bf16.msra.mxu0 %v853
  %873 = vmatprep.subr.bf16.mxu0 0
  %874 = vmatpush1.bf16.msra.mxu0 %v854
  %875 = vmatprep.subr.bf16.mxu0 0
  %876 = vmatpush1.bf16.msra.mxu0 %v855
  %877 = vmatprep.subr.bf16.mxu0 0
  %878 = vmatpush1.bf16.msra.mxu0 %v856
  %879 = vmatprep.subr.bf16.mxu0 0
  %880 = vmatpush1.bf16.msra.mxu0 %v857
  %881 = vmatprep.subr.bf16.mxu0 0
  %882 = vmatpush1.bf16.msra.mxu0 %v858
  %883 = vmatprep.subr.bf16.mxu0 0
  %884 = vmatpush1.bf16.msra.mxu0 0
  %885 = vmatprep.subr.bf16.mxu0 0
  %886 = vmatpush1.bf16.msra.mxu0 0
  %887 = vmatprep.subr.bf16.mxu0 0
  %888 = vmatpush1.bf16.msra.mxu0 0
  %889 = vmatprep.subr.bf16.mxu0 0
  %890 = vmatpush1.bf16.msra.mxu0 0
  %891 = vmatprep.subr.bf16.mxu0 0
  %892 = vmatpush1.bf16.msra.mxu0 0
  %893 = vmatprep.subr.bf16.mxu0 0
  %894 = vmatpush1.bf16.msra.mxu0 0
  %895 = vmatprep.subr.bf16.mxu0 0
  %896 = vmatpush1.bf16.msra.mxu0 0
  %897 = vmatprep.subr.bf16.mxu0 0
  %898 = vmatpush1.bf16.msra.mxu0 0
  %899 = vmatprep.mubr.bf16.mxu0 0
  %900 = vmatmul.mubr.bf16.gmra.mrb[0].mxu0 %v813
  %v901 = vpop.f32.mrb[0].mxu0
  %v902 = vadd.f32 0.0, %v901
  %v903 = vpop.f32.mrb[0].mxu0
  %v904 = vpop.f32.mrb[0].mxu0
  %v905 = vadd.f32 0.0, %v904
  %v906 = vpop.f32.mrb[0].mxu0
  %907 = vmatprep.mubr.bf16.mxu0 0
  %908 = vmatmul.mubr.bf16.gmra.mrb[0].mxu0 %v815
  %v909 = vpop.f32.mrb[0].mxu0
  %v910 = vadd.f32 0.0, %v909
  %v911 = vpop.f32.mrb[0].mxu0
  %v912 = vpop.f32.mrb[0].mxu0
  %v913 = vadd.f32 0.0, %v912
  %v914 = vpop.f32.mrb[0].mxu0
  %915 = vmatprep.mubr.bf16.mxu0 0
  %916 = vmatmul.mubr.bf16.gmra.mrb[0].mxu0 %v814
  %v917 = vpop.f32.mrb[0].mxu0
  %v918 = vadd.f32 0.0, %v917
  %v919 = vpop.f32.mrb[0].mxu0
  %v920 = vpop.f32.mrb[0].mxu0
  %v921 = vpop.f32.mrb[0].mxu0
  %922 = vdwg.mxu0
  %v923 = vadd.f32 %v771, %v902
  %v924 = vadd.f32 %v774, %v905
  %v925 = vadd.f32 %v779, %v910
  %v926 = vadd.f32 %v782, %v913
  %v927 = vadd.f32 %v787, %v918
  %v928 = vld [vmem:[%s4] sm:$0x1]
  %v930 = vlaneseq
  %v931 = vshrl.u32 %v930, 7
  %v932 = vsub.s32 0, %v931
  %v933 = vrot.slane %v928, %v932
  %v935 = vadd.f32 %v923, %v933
  %v936 = vadd.f32 %v924, %v933
  %v937 = vadd.f32 %v925, %v933
  %v938 = vadd.f32 %v926, %v933
  %v939 = vadd.f32 %v927, %v933
  %v940 = vmax.f32 %v935, 0.0
  %v941 = vmax.f32 %v936, 0.0
  %v942 = vmax.f32 %v937, 0.0
  %v943 = vmax.f32 %v938, 0.0
  %v944 = vmax.f32 %v939, 0.0
  %945 = vst [vmem:[%s5] sm:$0xff] %v940
  %946 = vst [vmem:[%s5 + $0x8] sm:$0xff] %v941
  %947 = vst [vmem:[%s5 + $0x10] sm:$0xff] %v942
  %948 = vst [vmem:[%s5 + $0x18] sm:$0xff] %v943
  %949 = vst [vmem:[%s5 + $0x20] sm:$0x3] %v944
  // Predicated region
  $region22: #{double_conv_apply.1} parent=0 // pred_check
    _
  $region23: #{double_conv_apply.1} parent=0 // pred_check_branch
    %951 = sbr.rel (0) target = $region25
  $region24: #{double_conv_apply.1} parent=0 // pred_region
    _
  $region25: #{double_conv_apply.1} parent=0 // pred_fallthru
    _
  // Predicated region
  $region26: #{double_conv_apply.1} parent=0 // pred_check
    _
  $region27: #{double_conv_apply.1} parent=0 // pred_check_branch
    %953 = sbr.rel (0) target = $region29
  $region28: #{double_conv_apply.1} parent=0 // pred_region
    _
  $region29: #{double_conv_apply.1} parent=0 // pred_fallthru
    _

</llo_original>
